<compile_context>
chip_gen: v5e
topology: v5e:2x2
jax: 0.10.0
libtpu: 0.0.40
codegen_flags: <defaults>
</compile_context>

<pallas_src>
import jax
import jax.numpy as jnp
from jax.experimental import pallas as pl
from jax.experimental.pallas import tpu as pltpu


def mlp_kernel(x_ref, w1_ref, b1_ref, w2_ref, b2_ref, w3_ref, b3_ref, o_ref):
    # ---- linear1: [TB,1280](bf16) @ [1280,128](bf16) + [1,128] -> ReLU ----
    x = x_ref[...]
    h1 = jnp.dot(x, w1_ref[...], preferred_element_type=jnp.float32) + b1_ref[...]
    h1 = jnp.maximum(h1, 0.0)
    # dropout(p=0.5) -> identity in eval mode (no-op at inference)

    # ---- linear2: [TB,128] @ [128,32] + [1,32] -> ReLU (f32 for accuracy) ----
    h2 = jnp.dot(h1, w2_ref[...], preferred_element_type=jnp.float32) + b2_ref[...]
    h2 = jnp.maximum(h2, 0.0)
    # dropout(p=0.5) -> identity in eval mode

    # ---- linear3 as VPU mul + lane reduce: sum(h2 * w3_row) + b3 -> sigmoid ----
    # w3_ref is the weight stored as a [1,32] row, so no MXU round trip and no
    # in-kernel transpose is needed.
    logits = jnp.sum(h2 * w3_ref[...], axis=-1, keepdims=True) + b3_ref[...]
    o_ref[...] = jax.nn.sigmoid(logits)


def mlp_forward(x, w1, b1, w2, b2, w3, b3, *, tb=256):
    """x: [B,1280] f32; w1:[1280,128], w2:[128,32], w3:[32,1] (in,out layout)."""
    B = x.shape[0]

    # Batch tile: big enough to fill the 256-wide MXU half on v6e/v7x, small
    # enough that double-buffered x tiles stay well inside v7x's 64 MiB VMEM.
    TB = min(tb, B)
    if TB != B and TB % 8 != 0:
        TB = B  # fall back to a single full block for odd tiny batches
    grid = (pl.cdiv(B, TB),)

    # bf16 inputs to the dominant matmul (halves w1 HBM traffic); f32 accum.
    x_bf16 = x.astype(jnp.bfloat16)
    w1_bf16 = w1.astype(jnp.bfloat16)

    # biases as [1, out] rows so they broadcast over the batch inside the kernel
    b1r = b1.reshape(1, -1).astype(jnp.float32)
    b2r = b2.reshape(1, -1).astype(jnp.float32)
    b3r = b3.reshape(1, -1).astype(jnp.float32)
    w3r = w3.reshape(1, -1).astype(jnp.float32)   # [1,32] row for the VPU reduce

    const = lambda a: pl.BlockSpec(a.shape, lambda i: tuple(0 for _ in a.shape))

    flops = 2 * B * (1280 * 128 + 128 * 32 + 32)
    bytes_accessed = (
        x_bf16.size * 2 + w1_bf16.size * 2
        + (w2.size + w3r.size + b1r.size + b2r.size + b3r.size) * 4
        + B * 4
    )

    out = pl.pallas_call(
        mlp_kernel,
        out_shape=jax.ShapeDtypeStruct((B, 1), jnp.float32),
        grid=grid,
        in_specs=[
            pl.BlockSpec((TB, 1280), lambda i: (i, 0)),   # x: tiled over batch
            const(w1_bf16),                               # weights resident
            const(b1r),
            const(w2),
            const(b2r),
            const(w3r),
            const(b3r),
        ],
        out_specs=pl.BlockSpec((TB, 1), lambda i: (i, 0)),
        compiler_params=pltpu.CompilerParams(
            dimension_semantics=("parallel",),            # v7x: shard batch over 2 TCs
        ),
        cost_estimate=pl.CostEstimate(
            flops=flops, transcendentals=B, bytes_accessed=bytes_accessed
        ),
    )(x_bf16, w1_bf16, b1r, w2, b2r, w3r, b3r)

    # squeeze() like the PyTorch module: [B, 1] -> [B]
    return jnp.squeeze(out)


def init_params(key):
    k1, k2, k3, k4, k5, k6 = jax.random.split(key, 6)
    # PyTorch Linear stores W as [out, in]; we build [in, out] directly.
    w1 = jax.random.normal(k1, (1280, 128), jnp.float32) * 0.02
    b1 = jax.random.normal(k2, (128,), jnp.float32) * 0.02
    w2 = jax.random.normal(k3, (128, 32), jnp.float32) * 0.02
    b2 = jax.random.normal(k4, (32,), jnp.float32) * 0.02
    w3 = jax.random.normal(k5, (32, 1), jnp.float32) * 0.02
    b3 = jax.random.normal(k6, (1,), jnp.float32) * 0.02
    return w1, b1, w2, b2, w3, b3


if __name__ == "__main__":
    key = jax.random.PRNGKey(0)
    kx, kp = jax.random.split(key)
    B = 8
    x = jax.random.normal(kx, (B, 1280), jnp.float32)
    params = init_params(kp)

    y = mlp_forward(x, *params)
    jax.block_until_ready(y)

    # sanity check against a reference that mirrors the kernel's bf16 first layer
    w1, b1, w2, b2, w3, b3 = params
    h = jnp.dot(x.astype(jnp.bfloat16), w1.astype(jnp.bfloat16),
                preferred_element_type=jnp.float32) + b1
    h = jnp.maximum(h, 0.0)
    h = jnp.maximum(jnp.dot(h, w2, preferred_element_type=jnp.float32) + b2, 0.0)
    ref = jnp.squeeze(jax.nn.sigmoid(jnp.sum(h * w3.reshape(1, -1), axis=-1,
                                             keepdims=True) + b3.reshape(1, -1)))
    assert y.shape == (B,), y.shape
    assert jnp.allclose(y, ref, atol=2e-3), "mismatch vs reference"

    # full-precision reference (loose tolerance due to bf16 first layer)
    hf = jnp.maximum(x @ w1 + b1, 0.0)
    hf = jnp.maximum(hf @ w2 + b2, 0.0)
    ref_f32 = jnp.squeeze(jax.nn.sigmoid(hf @ w3 + b3))
    assert jnp.allclose(y, ref_f32, atol=2e-2), "mismatch vs f32 reference"

    print("KERNEL_OK")
</pallas_src>

<mosaic_0001>
module attributes {stable_mosaic.version = 11 : i64} {
  func.func @mlp_kernel(%arg0: i32, %arg1: memref<8x1280xbf16, #tpu.memory_space<vmem>>, %arg2: memref<1280x128xbf16, #tpu.memory_space<vmem>>, %arg3: memref<1x128xf32, #tpu.memory_space<vmem>>, %arg4: memref<128x32xf32, #tpu.memory_space<vmem>>, %arg5: memref<1x32xf32, #tpu.memory_space<vmem>>, %arg6: memref<1x32xf32, #tpu.memory_space<vmem>>, %arg7: memref<1x1xf32, #tpu.memory_space<vmem>>, %arg8: memref<8x1xf32, #tpu.memory_space<vmem>>) attributes {dimension_semantics = [#tpu.dimension_semantics<parallel>], iteration_bounds = array<i64: 1>, scalar_prefetch = 0 : i64, scratch_operands = 0 : i64, tpu.core_type = #tpu.core_type<tc>, window_params = [{transform_indices = @transform_0, window_bounds = array<i64: 8, 1280>}, {pipeline_mode = #tpu.pipeline_mode<synchronous>, transform_indices = @transform_1, window_bounds = array<i64: 1280, 128>}, {pipeline_mode = #tpu.pipeline_mode<synchronous>, transform_indices = @transform_2, window_bounds = array<i64: 1, 128>}, {pipeline_mode = #tpu.pipeline_mode<synchronous>, transform_indices = @transform_3, window_bounds = array<i64: 128, 32>}, {pipeline_mode = #tpu.pipeline_mode<synchronous>, transform_indices = @transform_4, window_bounds = array<i64: 1, 32>}, {pipeline_mode = #tpu.pipeline_mode<synchronous>, transform_indices = @transform_5, window_bounds = array<i64: 1, 32>}, {pipeline_mode = #tpu.pipeline_mode<synchronous>, transform_indices = @transform_6, window_bounds = array<i64: 1, 1>}, {transform_indices = @transform_7, window_bounds = array<i64: 8, 1>}]} {
    %c0 = arith.constant 0 : index
    %c0_0 = arith.constant 0 : index
    %0 = vector.load %arg1[%c0, %c0_0] : memref<8x1280xbf16, #tpu.memory_space<vmem>>, vector<8x1280xbf16>
    %c0_1 = arith.constant 0 : index
    %c0_2 = arith.constant 0 : index
    %1 = vector.load %arg2[%c0_1, %c0_2] : memref<1280x128xbf16, #tpu.memory_space<vmem>>, vector<1280x128xbf16>
    %cst = arith.constant dense<0.000000e+00> : vector<8x128xf32>
    %2 = tpu.matmul %0, %1, %cst {dimension_numbers = #tpu.dot_dimension_numbers<[1], [0], [0], [1], [0, 0, 1, 1], [], []>} : vector<8x1280xbf16>, vector<1280x128xbf16>, vector<8x128xf32> -> vector<8x128xf32>
    %c0_3 = arith.constant 0 : index
    %c0_4 = arith.constant 0 : index
    %3 = vector.load %arg3[%c0_3, %c0_4] : memref<1x128xf32, #tpu.memory_space<vmem>>, vector<1x128xf32>
    %4 = vector.broadcast %3 : vector<1x128xf32> to vector<8x128xf32>
    %5 = arith.addf %2, %4 : vector<8x128xf32>
    %cst_5 = arith.constant 0.000000e+00 : f32
    %6 = vector.broadcast %cst_5 : f32 to vector<8x128xf32>
    %7 = arith.maximumf %5, %6 : vector<8x128xf32>
    %c0_6 = arith.constant 0 : index
    %c0_7 = arith.constant 0 : index
    %8 = vector.load %arg4[%c0_6, %c0_7] : memref<128x32xf32, #tpu.memory_space<vmem>>, vector<128x32xf32>
    %cst_8 = arith.constant dense<0.000000e+00> : vector<8x32xf32>
    %9 = tpu.matmul %7, %8, %cst_8 {dimension_numbers = #tpu.dot_dimension_numbers<[1], [0], [0], [1], [0, 0, 1, 1], [], []>} : vector<8x128xf32>, vector<128x32xf32>, vector<8x32xf32> -> vector<8x32xf32>
    %c0_9 = arith.constant 0 : index
    %c0_10 = arith.constant 0 : index
    %10 = vector.load %arg5[%c0_9, %c0_10] : memref<1x32xf32, #tpu.memory_space<vmem>>, vector<1x32xf32>
    %11 = vector.broadcast %10 : vector<1x32xf32> to vector<8x32xf32>
    %12 = arith.addf %9, %11 : vector<8x32xf32>
    %cst_11 = arith.constant 0.000000e+00 : f32
    %13 = vector.broadcast %cst_11 : f32 to vector<8x32xf32>
    %14 = arith.maximumf %12, %13 : vector<8x32xf32>
    %c0_12 = arith.constant 0 : index
    %c0_13 = arith.constant 0 : index
    %15 = vector.load %arg6[%c0_12, %c0_13] : memref<1x32xf32, #tpu.memory_space<vmem>>, vector<1x32xf32>
    %16 = vector.broadcast %15 : vector<1x32xf32> to vector<8x32xf32>
    %17 = arith.mulf %14, %16 : vector<8x32xf32>
    %cst_14 = arith.constant dense<0.000000e+00> : vector<8xf32>
    %18 = vector.multi_reduction <add>, %17, %cst_14 [1] : vector<8x32xf32> to vector<8xf32>
    %19 = vector.shape_cast %18 : vector<8xf32> to vector<8x1xf32>
    %c0_15 = arith.constant 0 : index
    %c0_16 = arith.constant 0 : index
    %20 = vector.load %arg7[%c0_15, %c0_16] : memref<1x1xf32, #tpu.memory_space<vmem>>, vector<1x1xf32>
    %21 = vector.broadcast %20 : vector<1x1xf32> to vector<8x1xf32>
    %22 = arith.addf %19, %21 : vector<8x1xf32>
    %23 = arith.negf %22 : vector<8x1xf32>
    %24 = math.exp %23 : vector<8x1xf32>
    %cst_17 = arith.constant 1.000000e+00 : f32
    %25 = vector.broadcast %cst_17 : f32 to vector<8x1xf32>
    %26 = arith.addf %25, %24 : vector<8x1xf32>
    %27 = arith.divf %25, %26 : vector<8x1xf32>
    %c0_18 = arith.constant 0 : index
    %c0_19 = arith.constant 0 : index
    %28 = vector.load %arg8[%c0_18, %c0_19] : memref<8x1xf32, #tpu.memory_space<vmem>>, vector<8x1xf32>
    tpu.vector_store %arg8[%c0_18, %c0_19], %27 {strides = array<i32>} : memref<8x1xf32, #tpu.memory_space<vmem>>, vector<8x1xf32>,
    return
  }
  func.func @transform_0(%arg0: i32) -> (i32, i32) {
    %c0_i32 = arith.constant 0 : i32
    %c0_i32_0 = arith.constant 0 : i32
    return %arg0, %c0_i32 : i32, i32
  }
  func.func @transform_1(%arg0: i32) -> (i32, i32) {
    %c0_i32 = arith.constant 0 : i32
    %c0_i32_0 = arith.constant 0 : i32
    %c0_i32_1 = arith.constant 0 : i32
    return %c0_i32, %c0_i32_0 : i32, i32
  }
  func.func @transform_2(%arg0: i32) -> (i32, i32) {
    %c0_i32 = arith.constant 0 : i32
    %c0_i32_0 = arith.constant 0 : i32
    %c0_i32_1 = arith.constant 0 : i32
    return %c0_i32, %c0_i32_0 : i32, i32
  }
  func.func @transform_3(%arg0: i32) -> (i32, i32) {
    %c0_i32 = arith.constant 0 : i32
    %c0_i32_0 = arith.constant 0 : i32
    %c0_i32_1 = arith.constant 0 : i32
    return %c0_i32, %c0_i32_0 : i32, i32
  }
  func.func @transform_4(%arg0: i32) -> (i32, i32) {
    %c0_i32 = arith.constant 0 : i32
    %c0_i32_0 = arith.constant 0 : i32
    %c0_i32_1 = arith.constant 0 : i32
    return %c0_i32, %c0_i32_0 : i32, i32
  }
  func.func @transform_5(%arg0: i32) -> (i32, i32) {
    %c0_i32 = arith.constant 0 : i32
    %c0_i32_0 = arith.constant 0 : i32
    %c0_i32_1 = arith.constant 0 : i32
    return %c0_i32, %c0_i32_0 : i32, i32
  }
  func.func @transform_6(%arg0: i32) -> (i32, i32) {
    %c0_i32 = arith.constant 0 : i32
    %c0_i32_0 = arith.constant 0 : i32
    %c0_i32_1 = arith.constant 0 : i32
    return %c0_i32, %c0_i32_0 : i32, i32
  }
  func.func @transform_7(%arg0: i32) -> (i32, i32) {
    %c0_i32 = arith.constant 0 : i32
    %c0_i32_0 = arith.constant 0 : i32
    return %arg0, %c0_i32 : i32, i32
  }
}

</mosaic_0001>

<llo_original>
// kernel: tpu_custom_call.1
$region0: #{tpu_custom_call.1}
  #allocation0 [shape = 'u32[]', space=smem, size = 0x4, offset = 0x4, fixed_abs, tag = 'smem constant byte address 0x4 - core index']
  #allocation1 [shape = 'u32[72,128]{1,0:T(1,128)}', space=vmem, size = 0x9000, scoped, tag = 'internal scratch']
  #allocation2 [shape = 'f32[1,1]{1,0:T(1,128)S(1)}', space=vmem, size = 0x200, scoped, tag = 'scoped memory for tpu_custom_call.1']
  %s0 = inlined_call_operand.vmem [shape: bf16[8,1280], index: 0, kind: input, shape index: {}]
  %s1 = inlined_call_operand.hbm [shape: bf16[1280,128], index: 1, kind: input, shape index: {}]
  %s2 = inlined_call_operand.vmem [shape: f32[1,128], index: 2, kind: input, shape index: {}]
  %s3 = inlined_call_operand.vmem [shape: f32[128,32], index: 3, kind: input, shape index: {}]
  %s4 = inlined_call_operand.vmem [shape: f32[1,32], index: 4, kind: input, shape index: {}]
  %s5 = inlined_call_operand.vmem [shape: f32[1,32], index: 5, kind: input, shape index: {}]
  %s6 = inlined_call_operand.<no memory space> [shape: f32[1,1], index: 6, kind: input, shape index: {}]
  %s7 = inlined_call_operand.vmem [shape: f32[8,1], index: 7, kind: output, shape index: {}]
  %s8 = sld [smem:[#allocation0]]
  $region42: #{tpu_custom_call.1} parent=0
    _
  %s10 = ssub.s32 1, %s8
  %s11 = scalar_select 0, %s10, %s8
  %v12 = vstv %s6
  %13 = vst [vmem:[#allocation2] sm:$0x1] %v12
  $region1: #{tpu_custom_call.1} parent=0
    #allocation3 [shape = 'u8[327680]{0}', space=vmem, size = 0x50000, scoped, tag = 'input window, operand 1, single buffered']
    #allocation4 [shape = 's32[1]{0}', space=sflag, size = 0x4, scoped, tag = 'scoped memory for tpu_custom_call.1']
    %14 = vsyncpa [#allocation4], 0
    // Predicated region
    $region2: #{tpu_custom_call.1} parent=1 // pred_check
      _
    $region3: #{tpu_custom_call.1} parent=1 // pred_check_branch
      %16 = sbr.rel (0) target = $region5
    $region4: #{tpu_custom_call.1} parent=1 // pred_region
      _
    $region5: #{tpu_custom_call.1} parent=1 // pred_fallthru
      _
    // Predicated region
    $region6: #{tpu_custom_call.1} parent=1 // pred_check
      _
    $region7: #{tpu_custom_call.1} parent=1 // pred_check_branch
      %18 = sbr.rel (0) target = $region9
    $region8: #{tpu_custom_call.1} parent=1 // pred_region
      %20 = vsyncadd [#allocation4], 0
      %s21 = sshll.u32 %s1, 4
      %s22 = int_to_ptr.hbm [resolvable:$true] %s21
      %s23 = sshll.u32 [#allocation3], 4
      %s24 = int_to_ptr.vmem [resolvable:$true] %s23
      %29 = dma.hbm_to_vmem [thread:$0]  %s22, 10240, %s24, [#allocation4], 64, 64, 4
    $region9: #{tpu_custom_call.1} parent=1 // pred_fallthru
      _
    // Predicated region
    $region10: #{tpu_custom_call.1} parent=1 // pred_check
      _
    $region11: #{tpu_custom_call.1} parent=1 // pred_check_branch
      %31 = sbr.rel (0) target = $region13
    $region12: #{tpu_custom_call.1} parent=1 // pred_region
      _
    $region13: #{tpu_custom_call.1} parent=1 // pred_fallthru
      _
    // Predicated region
    $region14: #{tpu_custom_call.1} parent=1 // pred_check
      _
    $region15: #{tpu_custom_call.1} parent=1 // pred_check_branch
      %33 = sbr.rel (0) target = $region17
    $region16: #{tpu_custom_call.1} parent=1 // pred_region
      _
    $region17: #{tpu_custom_call.1} parent=1 // pred_fallthru
      _
    // Predicated region
    $region18: #{tpu_custom_call.1} parent=1 // pred_check
      _
    $region19: #{tpu_custom_call.1} parent=1 // pred_check_branch
      %35 = sbr.rel (0) target = $region21
    $region20: #{tpu_custom_call.1} parent=1 // pred_region
      _
    $region21: #{tpu_custom_call.1} parent=1 // pred_fallthru
      _
    // Predicated region
    $region22: #{tpu_custom_call.1} parent=1 // pred_check
      _
    $region23: #{tpu_custom_call.1} parent=1 // pred_check_branch
      %37 = sbr.rel (0) target = $region25
    $region24: #{tpu_custom_call.1} parent=1 // pred_region
      _
    $region25: #{tpu_custom_call.1} parent=1 // pred_fallthru
      _
    // Predicated region
    $region26: #{tpu_custom_call.1} parent=1 // pred_check
      _
    $region27: #{tpu_custom_call.1} parent=1 // pred_check_branch
      %39 = sbr.rel (0) target = $region29
    $region28: #{tpu_custom_call.1} parent=1 // pred_region
      _
    $region29: #{tpu_custom_call.1} parent=1 // pred_fallthru
      _
    // Predicated region
    $region30: #{tpu_custom_call.1} parent=1 // pred_check
      _
    $region31: #{tpu_custom_call.1} parent=1 // pred_check_branch
      %41 = sbr.rel (0) target = $region33
    $region32: #{tpu_custom_call.1} parent=1 // pred_region
      %43 = dma.done [#allocation4], 10240
    $region33: #{tpu_custom_call.1} parent=1 // pred_fallthru
      _
    %v44 = vld [vmem:[%s0] sm:$0xff]
    %v45 = vld [vmem:[%s0 + $0x8] sm:$0xff]
    %v46 = vld [vmem:[%s0 + $0x10] sm:$0xff]
    %v47 = vld [vmem:[%s0 + $0x18] sm:$0xff]
    %v48 = vld [vmem:[%s0 + $0x20] sm:$0xff]
    %v49 = vld [vmem:[#allocation3] sm:$0xf]
    %v50 = vld [vmem:[#allocation3 + $0x4] sm:$0xf]
    %v51 = vld [vmem:[#allocation3 + $0x8] sm:$0xf]
    %v52 = vld [vmem:[#allocation3 + $0xc] sm:$0xf]
    %v53 = vld [vmem:[#allocation3 + $0x10] sm:$0xf]
    %v54 = vld [vmem:[#allocation3 + $0x14] sm:$0xf]
    %v55 = vld [vmem:[#allocation3 + $0x18] sm:$0xf]
    %v56 = vld [vmem:[#allocation3 + $0x1c] sm:$0xf]
    %v57 = vld [vmem:[#allocation3 + $0x20] sm:$0xf]
    %v58 = vld [vmem:[#allocation3 + $0x24] sm:$0xf]
    %v59 = vld [vmem:[#allocation3 + $0x28] sm:$0xf]
    %v60 = vld [vmem:[#allocation3 + $0x2c] sm:$0xf]
    %v61 = vld [vmem:[#allocation3 + $0x30] sm:$0xf]
    %v62 = vld [vmem:[#allocation3 + $0x34] sm:$0xf]
    %v63 = vld [vmem:[#allocation3 + $0x38] sm:$0xf]
    %v64 = vld [vmem:[#allocation3 + $0x3c] sm:$0xf]
    %v65 = vld [vmem:[#allocation3 + $0x40] sm:$0xf]
    %v66 = vld [vmem:[#allocation3 + $0x44] sm:$0xf]
    %v67 = vld [vmem:[#allocation3 + $0x48] sm:$0xf]
    %v68 = vld [vmem:[#allocation3 + $0x4c] sm:$0xf]
    %v69 = vld [vmem:[#allocation3 + $0x50] sm:$0xf]
    %v70 = vld [vmem:[#allocation3 + $0x54] sm:$0xf]
    %v71 = vld [vmem:[#allocation3 + $0x58] sm:$0xf]
    %v72 = vld [vmem:[#allocation3 + $0x5c] sm:$0xf]
    %v73 = vld [vmem:[#allocation3 + $0x60] sm:$0xf]
    %v74 = vld [vmem:[#allocation3 + $0x64] sm:$0xf]
    %v75 = vld [vmem:[#allocation3 + $0x68] sm:$0xf]
    %v76 = vld [vmem:[#allocation3 + $0x6c] sm:$0xf]
    %v77 = vld [vmem:[#allocation3 + $0x70] sm:$0xf]
    %v78 = vld [vmem:[#allocation3 + $0x74] sm:$0xf]
    %v79 = vld [vmem:[#allocation3 + $0x78] sm:$0xf]
    %v80 = vld [vmem:[#allocation3 + $0x7c] sm:$0xf]
    %v81 = vld [vmem:[#allocation3 + $0x80] sm:$0xf]
    %v82 = vld [vmem:[#allocation3 + $0x84] sm:$0xf]
    %v83 = vld [vmem:[#allocation3 + $0x88] sm:$0xf]
    %v84 = vld [vmem:[#allocation3 + $0x8c] sm:$0xf]
    %v85 = vld [vmem:[#allocation3 + $0x90] sm:$0xf]
    %v86 = vld [vmem:[#allocation3 + $0x94] sm:$0xf]
    %v87 = vld [vmem:[#allocation3 + $0x98] sm:$0xf]
    %v88 = vld [vmem:[#allocation3 + $0x9c] sm:$0xf]
    %v89 = vld [vmem:[#allocation3 + $0xa0] sm:$0xf]
    %v90 = vld [vmem:[#allocation3 + $0xa4] sm:$0xf]
    %v91 = vld [vmem:[#allocation3 + $0xa8] sm:$0xf]
    %v92 = vld [vmem:[#allocation3 + $0xac] sm:$0xf]
    %v93 = vld [vmem:[#allocation3 + $0xb0] sm:$0xf]
    %v94 = vld [vmem:[#allocation3 + $0xb4] sm:$0xf]
    %v95 = vld [vmem:[#allocation3 + $0xb8] sm:$0xf]
    %v96 = vld [vmem:[#allocation3 + $0xbc] sm:$0xf]
    %v97 = vld [vmem:[#allocation3 + $0xc0] sm:$0xf]
    %v98 = vld [vmem:[#allocation3 + $0xc4] sm:$0xf]
    %v99 = vld [vmem:[#allocation3 + $0xc8] sm:$0xf]
    %v100 = vld [vmem:[#allocation3 + $0xcc] sm:$0xf]
    %v101 = vld [vmem:[#allocation3 + $0xd0] sm:$0xf]
    %v102 = vld [vmem:[#allocation3 + $0xd4] sm:$0xf]
    %v103 = vld [vmem:[#allocation3 + $0xd8] sm:$0xf]
    %v104 = vld [vmem:[#allocation3 + $0xdc] sm:$0xf]
    %v105 = vld [vmem:[#allocation3 + $0xe0] sm:$0xf]
    %v106 = vld [vmem:[#allocation3 + $0xe4] sm:$0xf]
    %v107 = vld [vmem:[#allocation3 + $0xe8] sm:$0xf]
    %v108 = vld [vmem:[#allocation3 + $0xec] sm:$0xf]
    %v109 = vld [vmem:[#allocation3 + $0xf0] sm:$0xf]
    %v110 = vld [vmem:[#allocation3 + $0xf4] sm:$0xf]
    %v111 = vld [vmem:[#allocation3 + $0xf8] sm:$0xf]
    %v112 = vld [vmem:[#allocation3 + $0xfc] sm:$0xf]
    %v113 = vld [vmem:[#allocation3 + $0x100] sm:$0xf]
    %v114 = vld [vmem:[#allocation3 + $0x104] sm:$0xf]
    %v115 = vld [vmem:[#allocation3 + $0x108] sm:$0xf]
    %v116 = vld [vmem:[#allocation3 + $0x10c] sm:$0xf]
    %v117 = vld [vmem:[#allocation3 + $0x110] sm:$0xf]
    %v118 = vld [vmem:[#allocation3 + $0x114] sm:$0xf]
    %v119 = vld [vmem:[#allocation3 + $0x118] sm:$0xf]
    %v120 = vld [vmem:[#allocation3 + $0x11c] sm:$0xf]
    %v121 = vld [vmem:[#allocation3 + $0x120] sm:$0xf]
    %v122 = vld [vmem:[#allocation3 + $0x124] sm:$0xf]
    %v123 = vld [vmem:[#allocation3 + $0x128] sm:$0xf]
    %v124 = vld [vmem:[#allocation3 + $0x12c] sm:$0xf]
    %v125 = vld [vmem:[#allocation3 + $0x130] sm:$0xf]
    %v126 = vld [vmem:[#allocation3 + $0x134] sm:$0xf]
    %v127 = vld [vmem:[#allocation3 + $0x138] sm:$0xf]
    %v128 = vld [vmem:[#allocation3 + $0x13c] sm:$0xf]
    %v129 = vld [vmem:[#allocation3 + $0x140] sm:$0xf]
    %v130 = vld [vmem:[#allocation3 + $0x144] sm:$0xf]
    %v131 = vld [vmem:[#allocation3 + $0x148] sm:$0xf]
    %v132 = vld [vmem:[#allocation3 + $0x14c] sm:$0xf]
    %v133 = vld [vmem:[#allocation3 + $0x150] sm:$0xf]
    %v134 = vld [vmem:[#allocation3 + $0x154] sm:$0xf]
    %v135 = vld [vmem:[#allocation3 + $0x158] sm:$0xf]
    %v136 = vld [vmem:[#allocation3 + $0x15c] sm:$0xf]
    %v137 = vld [vmem:[#allocation3 + $0x160] sm:$0xf]
    %v138 = vld [vmem:[#allocation3 + $0x164] sm:$0xf]
    %v139 = vld [vmem:[#allocation3 + $0x168] sm:$0xf]
    %v140 = vld [vmem:[#allocation3 + $0x16c] sm:$0xf]
    %v141 = vld [vmem:[#allocation3 + $0x170] sm:$0xf]
    %v142 = vld [vmem:[#allocation3 + $0x174] sm:$0xf]
    %v143 = vld [vmem:[#allocation3 + $0x178] sm:$0xf]
    %v144 = vld [vmem:[#allocation3 + $0x17c] sm:$0xf]
    %v145 = vld [vmem:[#allocation3 + $0x180] sm:$0xf]
    %v146 = vld [vmem:[#allocation3 + $0x184] sm:$0xf]
    %v147 = vld [vmem:[#allocation3 + $0x188] sm:$0xf]
    %v148 = vld [vmem:[#allocation3 + $0x18c] sm:$0xf]
    %v149 = vld [vmem:[#allocation3 + $0x190] sm:$0xf]
    %v150 = vld [vmem:[#allocation3 + $0x194] sm:$0xf]
    %v151 = vld [vmem:[#allocation3 + $0x198] sm:$0xf]
    %v152 = vld [vmem:[#allocation3 + $0x19c] sm:$0xf]
    %v153 = vld [vmem:[#allocation3 + $0x1a0] sm:$0xf]
    %v154 = vld [vmem:[#allocation3 + $0x1a4] sm:$0xf]
    %v155 = vld [vmem:[#allocation3 + $0x1a8] sm:$0xf]
    %v156 = vld [vmem:[#allocation3 + $0x1ac] sm:$0xf]
    %v157 = vld [vmem:[#allocation3 + $0x1b0] sm:$0xf]
    %v158 = vld [vmem:[#allocation3 + $0x1b4] sm:$0xf]
    %v159 = vld [vmem:[#allocation3 + $0x1b8] sm:$0xf]
    %v160 = vld [vmem:[#allocation3 + $0x1bc] sm:$0xf]
    %v161 = vld [vmem:[#allocation3 + $0x1c0] sm:$0xf]
    %v162 = vld [vmem:[#allocation3 + $0x1c4] sm:$0xf]
    %v163 = vld [vmem:[#allocation3 + $0x1c8] sm:$0xf]
    %v164 = vld [vmem:[#allocation3 + $0x1cc] sm:$0xf]
    %v165 = vld [vmem:[#allocation3 + $0x1d0] sm:$0xf]
    %v166 = vld [vmem:[#allocation3 + $0x1d4] sm:$0xf]
    %v167 = vld [vmem:[#allocation3 + $0x1d8] sm:$0xf]
    %v168 = vld [vmem:[#allocation3 + $0x1dc] sm:$0xf]
    %v169 = vld [vmem:[#allocation3 + $0x1e0] sm:$0xf]
    %v170 = vld [vmem:[#allocation3 + $0x1e4] sm:$0xf]
    %v171 = vld [vmem:[#allocation3 + $0x1e8] sm:$0xf]
    %v172 = vld [vmem:[#allocation3 + $0x1ec] sm:$0xf]
    %v173 = vld [vmem:[#allocation3 + $0x1f0] sm:$0xf]
    %v174 = vld [vmem:[#allocation3 + $0x1f4] sm:$0xf]
    %v175 = vld [vmem:[#allocation3 + $0x1f8] sm:$0xf]
    %v176 = vld [vmem:[#allocation3 + $0x1fc] sm:$0xf]
    %v177 = vld [vmem:[#allocation3 + $0x200] sm:$0xf]
    %v178 = vld [vmem:[#allocation3 + $0x204] sm:$0xf]
    %v179 = vld [vmem:[#allocation3 + $0x208] sm:$0xf]
    %v180 = vld [vmem:[#allocation3 + $0x20c] sm:$0xf]
    %v181 = vld [vmem:[#allocation3 + $0x210] sm:$0xf]
    %v182 = vld [vmem:[#allocation3 + $0x214] sm:$0xf]
    %v183 = vld [vmem:[#allocation3 + $0x218] sm:$0xf]
    %v184 = vld [vmem:[#allocation3 + $0x21c] sm:$0xf]
    %v185 = vld [vmem:[#allocation3 + $0x220] sm:$0xf]
    %v186 = vld [vmem:[#allocation3 + $0x224] sm:$0xf]
    %v187 = vld [vmem:[#allocation3 + $0x228] sm:$0xf]
    %v188 = vld [vmem:[#allocation3 + $0x22c] sm:$0xf]
    %v189 = vld [vmem:[#allocation3 + $0x230] sm:$0xf]
    %v190 = vld [vmem:[#allocation3 + $0x234] sm:$0xf]
    %v191 = vld [vmem:[#allocation3 + $0x238] sm:$0xf]
    %v192 = vld [vmem:[#allocation3 + $0x23c] sm:$0xf]
    %v193 = vld [vmem:[#allocation3 + $0x240] sm:$0xf]
    %v194 = vld [vmem:[#allocation3 + $0x244] sm:$0xf]
    %v195 = vld [vmem:[#allocation3 + $0x248] sm:$0xf]
    %v196 = vld [vmem:[#allocation3 + $0x24c] sm:$0xf]
    %v197 = vld [vmem:[#allocation3 + $0x250] sm:$0xf]
    %v198 = vld [vmem:[#allocation3 + $0x254] sm:$0xf]
    %v199 = vld [vmem:[#allocation3 + $0x258] sm:$0xf]
    %v200 = vld [vmem:[#allocation3 + $0x25c] sm:$0xf]
    %v201 = vld [vmem:[#allocation3 + $0x260] sm:$0xf]
    %v202 = vld [vmem:[#allocation3 + $0x264] sm:$0xf]
    %v203 = vld [vmem:[#allocation3 + $0x268] sm:$0xf]
    %v204 = vld [vmem:[#allocation3 + $0x26c] sm:$0xf]
    %v205 = vld [vmem:[#allocation3 + $0x270] sm:$0xf]
    %v206 = vld [vmem:[#allocation3 + $0x274] sm:$0xf]
    %v207 = vld [vmem:[#allocation3 + $0x278] sm:$0xf]
    %v208 = vld [vmem:[#allocation3 + $0x27c] sm:$0xf]
    %v209 = vld [vmem:[%s2] sm:$0x1]
    %v211 = vperm.slane %v209, 0
    %v218 = vunpack.c.l.b16 %v44
    %v219 = vunpack.c.h.b16 %v44
    %v220 = vunpack.c.l.b16 %v45
    %v221 = vunpack.c.h.b16 %v45
    %v222 = vunpack.c.l.b16 %v46
    %v223 = vunpack.c.h.b16 %v46
    %v224 = vunpack.c.l.b16 %v47
    %v225 = vunpack.c.h.b16 %v47
    %v226 = vunpack.c.l.b16 %v48
    %v227 = vunpack.c.h.b16 %v48
    %v228 = vpack.c.b16 %v218, %v218
    %v229 = vpack.c.b16 %v219, %v219
    %v230 = vpack.c.b16 %v220, %v220
    %v231 = vpack.c.b16 %v221, %v221
    %v232 = vpack.c.b16 %v222, %v222
    %v233 = vpack.c.b16 %v223, %v223
    %v234 = vpack.c.b16 %v224, %v224
    %v235 = vpack.c.b16 %v225, %v225
    %v236 = vpack.c.b16 %v226, %v226
    %v237 = vpack.c.b16 %v227, %v227
    %v408 = vunpack.c.l.b16 %v49
    %v409 = vunpack.c.l.b16 %v50
    %v410 = vunpack.c.l.b16 %v51
    %v411 = vunpack.c.l.b16 %v52
    %v412 = vunpack.c.l.b16 %v53
    %v413 = vunpack.c.l.b16 %v54
    %v414 = vunpack.c.l.b16 %v55
    %v415 = vunpack.c.l.b16 %v56
    %v416 = vunpack.c.l.b16 %v57
    %v417 = vunpack.c.l.b16 %v58
    %v418 = vunpack.c.l.b16 %v59
    %v419 = vunpack.c.l.b16 %v60
    %v420 = vunpack.c.l.b16 %v61
    %v421 = vunpack.c.l.b16 %v62
    %v422 = vunpack.c.l.b16 %v63
    %v423 = vunpack.c.l.b16 %v64
    %v424 = vunpack.c.l.b16 %v65
    %v425 = vunpack.c.l.b16 %v66
    %v426 = vunpack.c.l.b16 %v67
    %v427 = vunpack.c.l.b16 %v68
    %v428 = vunpack.c.l.b16 %v69
    %v429 = vunpack.c.l.b16 %v70
    %v430 = vunpack.c.l.b16 %v71
    %v431 = vunpack.c.l.b16 %v72
    %v432 = vunpack.c.l.b16 %v73
    %v433 = vunpack.c.l.b16 %v74
    %v434 = vunpack.c.l.b16 %v75
    %v435 = vunpack.c.l.b16 %v76
    %v436 = vunpack.c.l.b16 %v77
    %v437 = vunpack.c.l.b16 %v78
    %v438 = vunpack.c.l.b16 %v79
    %v439 = vunpack.c.l.b16 %v80
    %v440 = vunpack.c.l.b16 %v81
    %v441 = vunpack.c.l.b16 %v82
    %v442 = vunpack.c.l.b16 %v83
    %v443 = vunpack.c.l.b16 %v84
    %v444 = vunpack.c.l.b16 %v85
    %v445 = vunpack.c.l.b16 %v86
    %v446 = vunpack.c.l.b16 %v87
    %v447 = vunpack.c.l.b16 %v88
    %v448 = vunpack.c.l.b16 %v89
    %v449 = vunpack.c.l.b16 %v90
    %v450 = vunpack.c.l.b16 %v91
    %v451 = vunpack.c.l.b16 %v92
    %v452 = vunpack.c.l.b16 %v93
    %v453 = vunpack.c.l.b16 %v94
    %v454 = vunpack.c.l.b16 %v95
    %v455 = vunpack.c.l.b16 %v96
    %v456 = vunpack.c.l.b16 %v97
    %v457 = vunpack.c.l.b16 %v98
    %v458 = vunpack.c.l.b16 %v99
    %v459 = vunpack.c.l.b16 %v100
    %v460 = vunpack.c.l.b16 %v101
    %v461 = vunpack.c.l.b16 %v102
    %v462 = vunpack.c.l.b16 %v103
    %v463 = vunpack.c.l.b16 %v104
    %v464 = vunpack.c.l.b16 %v105
    %v465 = vunpack.c.l.b16 %v106
    %v466 = vunpack.c.l.b16 %v107
    %v467 = vunpack.c.l.b16 %v108
    %v468 = vunpack.c.l.b16 %v109
    %v469 = vunpack.c.l.b16 %v110
    %v470 = vunpack.c.l.b16 %v111
    %v471 = vunpack.c.l.b16 %v112
    %v472 = vunpack.c.l.b16 %v113
    %v473 = vunpack.c.l.b16 %v114
    %v474 = vunpack.c.l.b16 %v115
    %v475 = vunpack.c.l.b16 %v116
    %v476 = vunpack.c.l.b16 %v117
    %v477 = vunpack.c.l.b16 %v118
    %v478 = vunpack.c.l.b16 %v119
    %v479 = vunpack.c.l.b16 %v120
    %v480 = vunpack.c.l.b16 %v121
    %v481 = vunpack.c.l.b16 %v122
    %v482 = vunpack.c.l.b16 %v123
    %v483 = vunpack.c.l.b16 %v124
    %v484 = vunpack.c.l.b16 %v125
    %v485 = vunpack.c.l.b16 %v126
    %v486 = vunpack.c.l.b16 %v127
    %v487 = vunpack.c.l.b16 %v128
    %v488 = vunpack.c.l.b16 %v129
    %v489 = vunpack.c.l.b16 %v130
    %v490 = vunpack.c.l.b16 %v131
    %v491 = vunpack.c.l.b16 %v132
    %v492 = vunpack.c.l.b16 %v133
    %v493 = vunpack.c.l.b16 %v134
    %v494 = vunpack.c.l.b16 %v135
    %v495 = vunpack.c.l.b16 %v136
    %v496 = vunpack.c.l.b16 %v137
    %v497 = vunpack.c.l.b16 %v138
    %v498 = vunpack.c.l.b16 %v139
    %v499 = vunpack.c.l.b16 %v140
    %v500 = vunpack.c.l.b16 %v141
    %v501 = vunpack.c.l.b16 %v142
    %v502 = vunpack.c.l.b16 %v143
    %v503 = vunpack.c.l.b16 %v144
    %v504 = vunpack.c.l.b16 %v145
    %v505 = vunpack.c.l.b16 %v146
    %v506 = vunpack.c.l.b16 %v147
    %v507 = vunpack.c.l.b16 %v148
    %v508 = vunpack.c.l.b16 %v149
    %v509 = vunpack.c.l.b16 %v150
    %v510 = vunpack.c.l.b16 %v151
    %v511 = vunpack.c.l.b16 %v152
    %v512 = vunpack.c.l.b16 %v153
    %v513 = vunpack.c.l.b16 %v154
    %v514 = vunpack.c.l.b16 %v155
    %v515 = vunpack.c.l.b16 %v156
    %v516 = vunpack.c.l.b16 %v157
    %v517 = vunpack.c.l.b16 %v158
    %v518 = vunpack.c.l.b16 %v159
    %v519 = vunpack.c.l.b16 %v160
    %v520 = vunpack.c.l.b16 %v161
    %v521 = vunpack.c.l.b16 %v162
    %v522 = vunpack.c.l.b16 %v163
    %v523 = vunpack.c.l.b16 %v164
    %v524 = vunpack.c.l.b16 %v165
    %v525 = vunpack.c.l.b16 %v166
    %v526 = vunpack.c.l.b16 %v167
    %v527 = vunpack.c.l.b16 %v168
    %v528 = vunpack.c.l.b16 %v169
    %v529 = vunpack.c.l.b16 %v170
    %v530 = vunpack.c.l.b16 %v171
    %v531 = vunpack.c.l.b16 %v172
    %v532 = vunpack.c.l.b16 %v173
    %v533 = vunpack.c.l.b16 %v174
    %v534 = vunpack.c.l.b16 %v175
    %v535 = vunpack.c.l.b16 %v176
    %v536 = vunpack.c.l.b16 %v177
    %v537 = vunpack.c.l.b16 %v178
    %v538 = vunpack.c.l.b16 %v179
    %v539 = vunpack.c.l.b16 %v180
    %v540 = vunpack.c.l.b16 %v181
    %v541 = vunpack.c.l.b16 %v182
    %v542 = vunpack.c.l.b16 %v183
    %v543 = vunpack.c.l.b16 %v184
    %v544 = vunpack.c.l.b16 %v185
    %v545 = vunpack.c.l.b16 %v186
    %v546 = vunpack.c.l.b16 %v187
    %v547 = vunpack.c.l.b16 %v188
    %v548 = vunpack.c.l.b16 %v189
    %v549 = vunpack.c.l.b16 %v190
    %v550 = vunpack.c.l.b16 %v191
    %v551 = vunpack.c.l.b16 %v192
    %v552 = vunpack.c.l.b16 %v193
    %v553 = vunpack.c.l.b16 %v194
    %v554 = vunpack.c.l.b16 %v195
    %v555 = vunpack.c.l.b16 %v196
    %v556 = vunpack.c.l.b16 %v197
    %v557 = vunpack.c.l.b16 %v198
    %v558 = vunpack.c.l.b16 %v199
    %v559 = vunpack.c.l.b16 %v200
    %v560 = vunpack.c.l.b16 %v201
    %v561 = vunpack.c.l.b16 %v202
    %v562 = vunpack.c.l.b16 %v203
    %v563 = vunpack.c.l.b16 %v204
    %v564 = vunpack.c.l.b16 %v205
    %v565 = vunpack.c.l.b16 %v206
    %v566 = vunpack.c.l.b16 %v207
    %v567 = vunpack.c.l.b16 %v208
    %v568 = vpack.c.b16 %v409, %v408
    %v569 = vpack.c.b16 %v411, %v410
    %v570 = vpack.c.b16 %v413, %v412
    %v571 = vpack.c.b16 %v415, %v414
    %v572 = vpack.c.b16 %v417, %v416
    %v573 = vpack.c.b16 %v419, %v418
    %v574 = vpack.c.b16 %v421, %v420
    %v575 = vpack.c.b16 %v423, %v422
    %v576 = vpack.c.b16 %v425, %v424
    %v577 = vpack.c.b16 %v427, %v426
    %v578 = vpack.c.b16 %v429, %v428
    %v579 = vpack.c.b16 %v431, %v430
    %v580 = vpack.c.b16 %v433, %v432
    %v581 = vpack.c.b16 %v435, %v434
    %v582 = vpack.c.b16 %v437, %v436
    %v583 = vpack.c.b16 %v439, %v438
    %v584 = vpack.c.b16 %v441, %v440
    %v585 = vpack.c.b16 %v443, %v442
    %v586 = vpack.c.b16 %v445, %v444
    %v587 = vpack.c.b16 %v447, %v446
    %v588 = vpack.c.b16 %v449, %v448
    %v589 = vpack.c.b16 %v451, %v450
    %v590 = vpack.c.b16 %v453, %v452
    %v591 = vpack.c.b16 %v455, %v454
    %v592 = vpack.c.b16 %v457, %v456
    %v593 = vpack.c.b16 %v459, %v458
    %v594 = vpack.c.b16 %v461, %v460
    %v595 = vpack.c.b16 %v463, %v462
    %v596 = vpack.c.b16 %v465, %v464
    %v597 = vpack.c.b16 %v467, %v466
    %v598 = vpack.c.b16 %v469, %v468
    %v599 = vpack.c.b16 %v471, %v470
    %v600 = vpack.c.b16 %v473, %v472
    %v601 = vpack.c.b16 %v475, %v474
    %v602 = vpack.c.b16 %v477, %v476
    %v603 = vpack.c.b16 %v479, %v478
    %v604 = vpack.c.b16 %v481, %v480
    %v605 = vpack.c.b16 %v483, %v482
    %v606 = vpack.c.b16 %v485, %v484
    %v607 = vpack.c.b16 %v487, %v486
    %v608 = vpack.c.b16 %v489, %v488
    %v609 = vpack.c.b16 %v491, %v490
    %v610 = vpack.c.b16 %v493, %v492
    %v611 = vpack.c.b16 %v495, %v494
    %v612 = vpack.c.b16 %v497, %v496
    %v613 = vpack.c.b16 %v499, %v498
    %v614 = vpack.c.b16 %v501, %v500
    %v615 = vpack.c.b16 %v503, %v502
    %v616 = vpack.c.b16 %v505, %v504
    %v617 = vpack.c.b16 %v507, %v506
    %v618 = vpack.c.b16 %v509, %v508
    %v619 = vpack.c.b16 %v511, %v510
    %v620 = vpack.c.b16 %v513, %v512
    %v621 = vpack.c.b16 %v515, %v514
    %v622 = vpack.c.b16 %v517, %v516
    %v623 = vpack.c.b16 %v519, %v518
    %v624 = vpack.c.b16 %v521, %v520
    %v625 = vpack.c.b16 %v523, %v522
    %v626 = vpack.c.b16 %v525, %v524
    %v627 = vpack.c.b16 %v527, %v526
    %v628 = vpack.c.b16 %v529, %v528
    %v629 = vpack.c.b16 %v531, %v530
    %v630 = vpack.c.b16 %v533, %v532
    %v631 = vpack.c.b16 %v535, %v534
    %v632 = vpack.c.b16 %v537, %v536
    %v633 = vpack.c.b16 %v539, %v538
    %v634 = vpack.c.b16 %v541, %v540
    %v635 = vpack.c.b16 %v543, %v542
    %v636 = vpack.c.b16 %v545, %v544
    %v637 = vpack.c.b16 %v547, %v546
    %v638 = vpack.c.b16 %v549, %v548
    %v639 = vpack.c.b16 %v551, %v550
    %v640 = vpack.c.b16 %v553, %v552
    %v641 = vpack.c.b16 %v555, %v554
    %v642 = vpack.c.b16 %v557, %v556
    %v643 = vpack.c.b16 %v559, %v558
    %v644 = vpack.c.b16 %v561, %v560
    %v645 = vpack.c.b16 %v563, %v562
    %v646 = vpack.c.b16 %v565, %v564
    %v647 = vpack.c.b16 %v567, %v566
    %728 = vmatpush.bf16.msra.mxu0 %v575
    %729 = vmatpush.bf16.msra.mxu0 %v574
    %730 = vmatpush.bf16.msra.mxu0 %v573
    %731 = vmatpush.bf16.msra.mxu0 %v572
    %732 = vmatpush.bf16.msra.mxu0 %v571
    %733 = vmatpush.bf16.msra.mxu0 %v570
    %734 = vmatpush.bf16.msra.mxu0 %v569
    %735 = vmatpush.bf16.msra.mxu0 %v568
    %736 = vmatmul.bf16.gmra.mxu0 %v228
    %v737 = vpop.f32.mrf.mxu0
    %v738 = vadd.f32 %v211, %v737
    %v739 = vpop.f32.mrf.mxu0
    %740 = vdwg.mxu0
    %741 = vmatpush.bf16.msra.mxu0 %v583
    %742 = vmatpush.bf16.msra.mxu0 %v582
    %743 = vmatpush.bf16.msra.mxu0 %v581
    %744 = vmatpush.bf16.msra.mxu0 %v580
    %745 = vmatpush.bf16.msra.mxu0 %v579
    %746 = vmatpush.bf16.msra.mxu0 %v578
    %747 = vmatpush.bf16.msra.mxu0 %v577
    %748 = vmatpush.bf16.msra.mxu0 %v576
    %749 = vmatmul.bf16.gmra.mxu0 %v229
    %v750 = vpop.f32.mrf.mxu0
    %v751 = vadd.f32 %v738, %v750
    %v752 = vpop.f32.mrf.mxu0
    %753 = vdwg.mxu0
    %754 = vmatpush.bf16.msra.mxu0 %v591
    %755 = vmatpush.bf16.msra.mxu0 %v590
    %756 = vmatpush.bf16.msra.mxu0 %v589
    %757 = vmatpush.bf16.msra.mxu0 %v588
    %758 = vmatpush.bf16.msra.mxu0 %v587
    %759 = vmatpush.bf16.msra.mxu0 %v586
    %760 = vmatpush.bf16.msra.mxu0 %v585
    %761 = vmatpush.bf16.msra.mxu0 %v584
    %762 = vmatmul.bf16.gmra.mxu0 %v230
    %v763 = vpop.f32.mrf.mxu0
    %v764 = vadd.f32 %v751, %v763
    %v765 = vpop.f32.mrf.mxu0
    %766 = vdwg.mxu0
    %767 = vmatpush.bf16.msra.mxu0 %v599
    %768 = vmatpush.bf16.msra.mxu0 %v598
    %769 = vmatpush.bf16.msra.mxu0 %v597
    %770 = vmatpush.bf16.msra.mxu0 %v596
    %771 = vmatpush.bf16.msra.mxu0 %v595
    %772 = vmatpush.bf16.msra.mxu0 %v594
    %773 = vmatpush.bf16.msra.mxu0 %v593
    %774 = vmatpush.bf16.msra.mxu0 %v592
    %775 = vmatmul.bf16.gmra.mxu0 %v231
    %v776 = vpop.f32.mrf.mxu0
    %v777 = vadd.f32 %v764, %v776
    %v778 = vpop.f32.mrf.mxu0
    %779 = vdwg.mxu0
    %780 = vmatpush.bf16.msra.mxu0 %v607
    %781 = vmatpush.bf16.msra.mxu0 %v606
    %782 = vmatpush.bf16.msra.mxu0 %v605
    %783 = vmatpush.bf16.msra.mxu0 %v604
    %784 = vmatpush.bf16.msra.mxu0 %v603
    %785 = vmatpush.bf16.msra.mxu0 %v602
    %786 = vmatpush.bf16.msra.mxu0 %v601
    %787 = vmatpush.bf16.msra.mxu0 %v600
    %788 = vmatmul.bf16.gmra.mxu0 %v232
    %v789 = vpop.f32.mrf.mxu0
    %v790 = vadd.f32 %v777, %v789
    %v791 = vpop.f32.mrf.mxu0
    %792 = vdwg.mxu0
    %793 = vmatpush.bf16.msra.mxu0 %v615
    %794 = vmatpush.bf16.msra.mxu0 %v614
    %795 = vmatpush.bf16.msra.mxu0 %v613
    %796 = vmatpush.bf16.msra.mxu0 %v612
    %797 = vmatpush.bf16.msra.mxu0 %v611
    %798 = vmatpush.bf16.msra.mxu0 %v610
    %799 = vmatpush.bf16.msra.mxu0 %v609
    %800 = vmatpush.bf16.msra.mxu0 %v608
    %801 = vmatmul.bf16.gmra.mxu0 %v233
    %v802 = vpop.f32.mrf.mxu0
    %v803 = vadd.f32 %v790, %v802
    %v804 = vpop.f32.mrf.mxu0
    %805 = vdwg.mxu0
    %806 = vmatpush.bf16.msra.mxu0 %v623
    %807 = vmatpush.bf16.msra.mxu0 %v622
    %808 = vmatpush.bf16.msra.mxu0 %v621
    %809 = vmatpush.bf16.msra.mxu0 %v620
    %810 = vmatpush.bf16.msra.mxu0 %v619
    %811 = vmatpush.bf16.msra.mxu0 %v618
    %812 = vmatpush.bf16.msra.mxu0 %v617
    %813 = vmatpush.bf16.msra.mxu0 %v616
    %814 = vmatmul.bf16.gmra.mxu0 %v234
    %v815 = vpop.f32.mrf.mxu0
    %v816 = vadd.f32 %v803, %v815
    %v817 = vpop.f32.mrf.mxu0
    %818 = vdwg.mxu0
    %819 = vmatpush.bf16.msra.mxu0 %v631
    %820 = vmatpush.bf16.msra.mxu0 %v630
    %821 = vmatpush.bf16.msra.mxu0 %v629
    %822 = vmatpush.bf16.msra.mxu0 %v628
    %823 = vmatpush.bf16.msra.mxu0 %v627
    %824 = vmatpush.bf16.msra.mxu0 %v626
    %825 = vmatpush.bf16.msra.mxu0 %v625
    %826 = vmatpush.bf16.msra.mxu0 %v624
    %827 = vmatmul.bf16.gmra.mxu0 %v235
    %v828 = vpop.f32.mrf.mxu0
    %v829 = vadd.f32 %v816, %v828
    %v830 = vpop.f32.mrf.mxu0
    %831 = vdwg.mxu0
    %832 = vmatpush.bf16.msra.mxu0 %v639
    %833 = vmatpush.bf16.msra.mxu0 %v638
    %834 = vmatpush.bf16.msra.mxu0 %v637
    %835 = vmatpush.bf16.msra.mxu0 %v636
    %836 = vmatpush.bf16.msra.mxu0 %v635
    %837 = vmatpush.bf16.msra.mxu0 %v634
    %838 = vmatpush.bf16.msra.mxu0 %v633
    %839 = vmatpush.bf16.msra.mxu0 %v632
    %840 = vmatmul.bf16.gmra.mxu0 %v236
    %v841 = vpop.f32.mrf.mxu0
    %v842 = vadd.f32 %v829, %v841
    %v843 = vpop.f32.mrf.mxu0
    %844 = vdwg.mxu0
    %845 = vmatpush.bf16.msra.mxu0 %v647
    %846 = vmatpush.bf16.msra.mxu0 %v646
    %847 = vmatpush.bf16.msra.mxu0 %v645
    %848 = vmatpush.bf16.msra.mxu0 %v644
    %849 = vmatpush.bf16.msra.mxu0 %v643
    %850 = vmatpush.bf16.msra.mxu0 %v642
    %851 = vmatpush.bf16.msra.mxu0 %v641
    %852 = vmatpush.bf16.msra.mxu0 %v640
    %853 = vmatmul.bf16.gmra.mxu0 %v237
    %v854 = vpop.f32.mrf.mxu0
    %v855 = vadd.f32 %v842, %v854
    %v856 = vpop.f32.mrf.mxu0
    %857 = vdwg.mxu0
    %v858 = vmax.f32 %v855, 0.0
    %v859 = vld [vmem:[%s3] sm:$0xff]
    %v860 = vld [vmem:[%s3 + $0x8] sm:$0xff]
    %v861 = vld [vmem:[%s3 + $0x10] sm:$0xff]
    %v862 = vld [vmem:[%s3 + $0x18] sm:$0xff]
    %v863 = vld [vmem:[%s3 + $0x20] sm:$0xff]
    %v864 = vld [vmem:[%s3 + $0x28] sm:$0xff]
    %v865 = vld [vmem:[%s3 + $0x30] sm:$0xff]
    %v866 = vld [vmem:[%s3 + $0x38] sm:$0xff]
    %v867 = vld [vmem:[%s3 + $0x40] sm:$0xff]
    %v868 = vld [vmem:[%s3 + $0x48] sm:$0xff]
    %v869 = vld [vmem:[%s3 + $0x50] sm:$0xff]
    %v870 = vld [vmem:[%s3 + $0x58] sm:$0xff]
    %v871 = vld [vmem:[%s3 + $0x60] sm:$0xff]
    %v872 = vld [vmem:[%s3 + $0x68] sm:$0xff]
    %v873 = vld [vmem:[%s3 + $0x70] sm:$0xff]
    %v874 = vld [vmem:[%s3 + $0x78] sm:$0xff]
    %v875 = vld [vmem:[%s4] sm:$0x1]
    %v877 = vperm.slane %v875, 0
    %879 = vmatpush.msra.mxu0 %v874
    %880 = vmatpush.msra.mxu0 %v873
    %881 = vmatpush.msra.mxu0 %v872
    %882 = vmatpush.msra.mxu0 %v871
    %883 = vmatpush.msra.mxu0 %v870
    %884 = vmatpush.msra.mxu0 %v869
    %885 = vmatpush.msra.mxu0 %v868
    %886 = vmatpush.msra.mxu0 %v867
    %887 = vmatpush.msra.mxu0 %v866
    %888 = vmatpush.msra.mxu0 %v865
    %889 = vmatpush.msra.mxu0 %v864
    %890 = vmatpush.msra.mxu0 %v863
    %891 = vmatpush.msra.mxu0 %v862
    %892 = vmatpush.msra.mxu0 %v861
    %893 = vmatpush.msra.mxu0 %v860
    %894 = vmatpush.msra.mxu0 %v859
    %895 = vmatmul.f32.gmra.mxu0 %v858
    %v896 = vpop.f32.mrf.mxu0
    %v897 = vadd.f32 %v877, %v896
    %898 = vdwg.mxu0
    %v899 = vmax.f32 %v897, 0.0
    %v900 = vld [vmem:[%s5] sm:$0x1]
    %v902 = vperm.slane %v900, 0
    %v904 = vmul.f32 %v899, %v902
    %vm905 = vcmask 261120
    %v906 = vsel %vm905, %v904, 0.0
    %907 = vadd.xlane.f32.xlu0 %v906
    %v908 = vpop.xlane.xlu0 %907
    %v909 = vld [vmem:[#allocation2] sm:$0x1]
    %v911 = vperm.slane %v909, 0
    %v913 = vadd.f32 %v908, %v911
    %v914 = vxor.u32 %v913, 2147483648
    %v915 = vmul.f32 %v914, 1.442695
    %v916 = vpow.pop %v915
    %v917 = vadd.f32 %v916, 1.0
    %v918 = vrcp.pop %v917
    %v919 = vmul.f32 %v917, %v918
    %v920 = vsub.f32 1.0, %v919
    %v921 = vmul.f32 %v918, %v920
    %v922 = vadd.f32 %v918, %v921
    %vm923 = vweird.f32 %v917
    %vm924 = vweird.f32 %v918
    %vm925 = vmor %vm923, %vm924
    %v926 = vsel %vm925, %v918, %v922
    %v927 = vand.u32 2147483647, %v917
    %vm928 = vcmp.eq.f32.partialorder %v927, 8.507059e+37
    %v929 = vand.u32 %v917, 2147483648
    %v930 = vor.u32 1.1754944e-38, %v929
    %v931 = vsel %vm928, %v930, %v926
    %v932 = vmul.f32 1.0, %v931
    %vm933 = vcmask 7168
    %934 = vst.msk [vmem:[%s7] sm:$0xff] %vm933, %v932
    // Predicated region
    $region34: #{tpu_custom_call.1} parent=1 // pred_check
      _
    $region35: #{tpu_custom_call.1} parent=1 // pred_check_branch
      %936 = sbr.rel (0) target = $region37
    $region36: #{tpu_custom_call.1} parent=1 // pred_region
      _
    $region37: #{tpu_custom_call.1} parent=1 // pred_fallthru
      _
    // Predicated region
    $region38: #{tpu_custom_call.1} parent=1 // pred_check
      _
    $region39: #{tpu_custom_call.1} parent=1 // pred_check_branch
      %938 = sbr.rel (0) target = $region41
    $region40: #{tpu_custom_call.1} parent=1 // pred_region
      _
    $region41: #{tpu_custom_call.1} parent=1 // pred_fallthru
      _
    %939 = vsyncpa [#allocation4], 1

</llo_original>
